<compile_context>
chip_gen: v6e
topology: v6e:2x2x1
jax: 0.10.0
libtpu: 0.0.40
codegen_flags: <defaults>
</compile_context>

<pallas_src>
import functools

import jax
import jax.numpy as jnp
from jax.experimental import pallas as pl
from jax.experimental.pallas import tpu as pltpu


def loss_kernel(t1_ref, t2_ref, s1_ref, s2_ref, y_ref, out_ref, acc_ref, *,
                batch, block_rows, tiles_per_core, label_resident,
                w_text, w_sem, margin):
    """One (core, batch-tile) step: accumulate weighted per-sample cosine losses."""
    c = pl.program_id(0)            # TensorCore split axis ("parallel")
    i = pl.program_id(1)            # sequential reduction axis ("arbitrary")

    @pl.when(i == 0)
    def _init():
        acc_ref[...] = jnp.zeros_like(acc_ref)

    # Logical (unclamped) tile index / row offset for this step.  The BlockSpec
    # index_map clamps the *fetched* block; rows past `batch` are masked below.
    tile = c * tiles_per_core + i
    row0 = pl.multiple_of(tile * block_rows, 8)

    if label_resident:
        y = y_ref[pl.ds(row0, block_rows), :].astype(jnp.float32)    # (TB, 1)
    else:
        y = y_ref[...].astype(jnp.float32)                           # (TB, 1)

    rows = row0 + jax.lax.broadcasted_iota(jnp.int32, y.shape, 0)
    valid = rows < batch                                             # (TB, 1) bool

    def tile_loss_sum(x1_ref, x2_ref):
        # Upcast per tile (inputs may arrive bf16 over the wire; v5e VPU needs f32).
        x1 = x1_ref[...].astype(jnp.float32)                         # (TB, D)
        x2 = x2_ref[...].astype(jnp.float32)                         # (TB, D)
        dot = jnp.sum(x1 * x2, axis=-1, keepdims=True)               # (TB, 1)
        n1sq = jnp.sum(x1 * x1, axis=-1, keepdims=True)
        n2sq = jnp.sum(x2 * x2, axis=-1, keepdims=True)
        # TODO(synk): if the bf16 + large-tile config flips VALU-bound on v7x, offload
        # these three D-axis reductions to the idle MXU via jnp.dot(x, ones((D, 1))).
        # rsqrt of the clamped product of squared norms == 1 / max(||x1||*||x2||, 1e-8).
        cos = dot * jax.lax.rsqrt(jnp.maximum(n1sq * n2sq, jnp.float32(1e-16)))
        per = jnp.where(y > 0.0, 1.0 - cos, jnp.maximum(cos - margin, 0.0))
        per = jnp.where(valid, per, 0.0)   # true select: drops garbage/NaN padded rows
        return jnp.sum(per, axis=0, keepdims=True)                   # (1, 1) partial

    # Weights already fold in the 1/B of the mean reduction.
    acc_ref[...] += (w_text * tile_loss_sum(t1_ref, t2_ref)
                     + w_sem * tile_loss_sum(s1_ref, s2_ref))

    @pl.when(i == pl.num_programs(1) - 1)
    def _finalize():
        out_ref[0] = acc_ref[...]          # this core's partial sum -> block (c, 0, 0)


def loss_func(text_1_cls, text_2_cls, semantic_1_cls, semantic_2_cls, label, *,
              ratio_cls, ratio_model_output, margin=0.2, block_rows=None,
              core_splits=2):
    """Combined cosine-embedding loss (forward of the PyTorch LossFunc module).

    Pass embeddings in their native wire dtype (bf16 recommended: this kernel is
    HBM-bandwidth bound, so halving bytes is ~2x on every TPU generation).
    """
    B, D = text_1_cls.shape
    itemsize = jnp.dtype(text_1_cls.dtype).itemsize

    # ---- per-generation VMEM budget -> tile rows + raised vmem limit -------------
    try:
        vmem_cap = int(getattr(pltpu.get_tpu_info(), "vmem_capacity_bytes", 0)) or (64 << 20)
    except Exception:  # info unavailable: assume the smallest (v7x) per-core VMEM
        vmem_cap = 64 << 20
    vmem_limit = (vmem_cap * 3) // 4          # ~48 MiB on v7x, ~96 MiB on v5e/v6e

    if block_rows is None:
        # 4 embedding streams x 2 pipeline buffers budgeted at ~half the limit; the
        # other half covers in-kernel f32 upcast temporaries, resident label and slack.
        input_budget = vmem_limit // 2
        tb = input_budget // (8 * D * itemsize)
        tb = int(max(16, min(2048, (tb // 16) * 16)))   # 16-row align (bf16 packing)
    else:
        align = 8 if itemsize >= 4 else 16
        tb = int(max(align, (int(block_rows) // align) * align))

    if B <= tb:
        tb, tiles_total = B, 1                 # full-extent block is always legal
    else:
        tiles_total = -(-B // tb)

    # ---- split tiles across (up to) two TensorCores ------------------------------
    num_cores = max(1, min(int(core_splits), tiles_total))
    tiles_per_core = -(-tiles_total // num_cores)
    b_pad = num_cores * tiles_per_core * tb
    last_block = tiles_total - 1

    def emb_index_map(c, i):
        # Clamp the fetched block; a repeated block index lets Pallas skip the re-DMA
        # for the (at most one) fully-masked duplicate tile of the core split.
        return (jnp.minimum(c * tiles_per_core + i, last_block), 0)

    lbl = jnp.reshape(label, (B, 1)).astype(jnp.float32)
    label_resident = (b_pad * 4) <= (2 << 20)
    if label_resident:
        if b_pad > B:
            lbl = jnp.pad(lbl, ((0, b_pad - B), (0, 0)), constant_values=-1.0)
        lbl_spec = pl.BlockSpec((b_pad, 1), lambda c, i: (0, 0))     # resident: one DMA
    else:
        lbl_spec = pl.BlockSpec((tb, 1), emb_index_map)              # tiny per-step DMA

    kernel = functools.partial(
        loss_kernel,
        batch=B, block_rows=tb, tiles_per_core=tiles_per_core,
        label_resident=label_resident,
        w_text=float(ratio_cls) / B, w_sem=float(ratio_model_output) / B,
        margin=float(margin))

    emb_spec = pl.BlockSpec((tb, D), emb_index_map)

    partials = pl.pallas_call(
        kernel,
        grid=(num_cores, tiles_per_core),
        in_specs=[emb_spec, emb_spec, emb_spec, emb_spec, lbl_spec],
        out_specs=pl.BlockSpec((1, 1, 1), lambda c, i: (c, 0, 0)),
        out_shape=jax.ShapeDtypeStruct((num_cores, 1, 1), jnp.float32),
        scratch_shapes=[pltpu.VMEM((1, 1), jnp.float32)],
        compiler_params=pltpu.CompilerParams(
            dimension_semantics=("parallel", "arbitrary"),
            vmem_limit_bytes=int(vmem_limit)),
    )(text_1_cls, text_2_cls, semantic_1_cls, semantic_2_cls, lbl)

    return jnp.sum(partials)                   # sum per-core partial losses


def _reference(t1, t2, s1, s2, y, ratio_cls, ratio_model_output, margin=0.2):
    """Pure-JAX reference mirroring torch.nn.CosineEmbeddingLoss(margin=0.2)."""
    def cel(x1, x2, y):
        dot = jnp.sum(x1 * x2, axis=-1)
        denom = jnp.maximum(
            jnp.linalg.norm(x1, axis=-1) * jnp.linalg.norm(x2, axis=-1), 1e-8)
        cos = dot / denom
        per = jnp.where(y > 0, 1.0 - cos, jnp.maximum(cos - margin, 0.0))
        return jnp.mean(per)
    return ratio_cls * cel(t1, t2, y) + ratio_model_output * cel(s1, s2, y)


if __name__ == "__main__":
    key = jax.random.PRNGKey(0)
    k1, k2, k3, k4, k5 = jax.random.split(key, 5)

    # Small shapes; B deliberately not a multiple of the test tile sizes so both the
    # ragged tail and the two-way core split (with one fully masked duplicate tile)
    # are exercised.
    B, D = 20, 32
    text_1 = jax.random.normal(k1, (B, D), dtype=jnp.float32)
    text_2 = jax.random.normal(k2, (B, D), dtype=jnp.float32)
    sem_1 = jax.random.normal(k3, (B, D), dtype=jnp.float32)
    sem_2 = jax.random.normal(k4, (B, D), dtype=jnp.float32)
    # labels in {+1, -1}, as torch.nn.CosineEmbeddingLoss expects
    label = (jax.random.bernoulli(k5, 0.5, (B,)).astype(jnp.float32) * 2.0 - 1.0)

    ratio_cls = 0.7
    ratio_model_output = 0.3

    ref = _reference(text_1, text_2, sem_1, sem_2, label,
                     ratio_cls, ratio_model_output)

    # 1) Multi-tile path: 2 core-splits x 2 tiles of 8 rows, ragged tail + masked dup.
    out_tiled = loss_func(text_1, text_2, sem_1, sem_2, label,
                          ratio_cls=ratio_cls, ratio_model_output=ratio_model_output,
                          block_rows=8)
    out_tiled = jax.block_until_ready(out_tiled)
    assert jnp.allclose(out_tiled, ref, rtol=1e-5, atol=1e-5), (out_tiled, ref)

    # 2) Default (VMEM-budgeted) path: collapses to a single full-batch tile here.
    out_auto = loss_func(text_1, text_2, sem_1, sem_2, label,
                         ratio_cls=ratio_cls, ratio_model_output=ratio_model_output)
    out_auto = jax.block_until_ready(out_auto)
    assert jnp.allclose(out_auto, ref, rtol=1e-5, atol=1e-5), (out_auto, ref)

    # 3) bf16 on the wire (kernel upcasts per tile); compare against the reference
    #    evaluated on the same bf16-rounded values.
    t1b, t2b = text_1.astype(jnp.bfloat16), text_2.astype(jnp.bfloat16)
    s1b, s2b = sem_1.astype(jnp.bfloat16), sem_2.astype(jnp.bfloat16)
    ref_bf = _reference(t1b.astype(jnp.float32), t2b.astype(jnp.float32),
                        s1b.astype(jnp.float32), s2b.astype(jnp.float32),
                        label, ratio_cls, ratio_model_output)
    out_bf = loss_func(t1b, t2b, s1b, s2b, label,
                       ratio_cls=ratio_cls, ratio_model_output=ratio_model_output,
                       block_rows=16)
    out_bf = jax.block_until_ready(out_bf)
    assert jnp.allclose(out_bf, ref_bf, rtol=1e-4, atol=1e-4), (out_bf, ref_bf)

    print("KERNEL_OK")
</pallas_src>

<mosaic_0001>
module attributes {stable_mosaic.version = 11 : i64} {
  func.func @loss_kernel(%arg0: i32, %arg1: i32, %arg2: memref<8x32xf32, #tpu.memory_space<vmem>>, %arg3: memref<8x32xf32, #tpu.memory_space<vmem>>, %arg4: memref<8x32xf32, #tpu.memory_space<vmem>>, %arg5: memref<8x32xf32, #tpu.memory_space<vmem>>, %arg6: memref<32x1xf32, #tpu.memory_space<vmem>>, %arg7: memref<1x1x1xf32, #tpu.memory_space<vmem>>, %arg8: memref<1x1xf32, #tpu.memory_space<vmem>>) attributes {dimension_semantics = [#tpu.dimension_semantics<parallel>, #tpu.dimension_semantics<arbitrary>], iteration_bounds = array<i64: 2, 2>, scalar_prefetch = 0 : i64, scratch_operands = 1 : i64, tpu.core_type = #tpu.core_type<tc>, window_params = [{transform_indices = @transform_0, window_bounds = array<i64: 8, 32>}, {transform_indices = @transform_1, window_bounds = array<i64: 8, 32>}, {transform_indices = @transform_2, window_bounds = array<i64: 8, 32>}, {transform_indices = @transform_3, window_bounds = array<i64: 8, 32>}, {pipeline_mode = #tpu.pipeline_mode<synchronous>, transform_indices = @transform_4, window_bounds = array<i64: 32, 1>}, {transform_indices = @transform_5, window_bounds = array<i64: 1, 1, 1>}]} {
    %c0_i32 = arith.constant 0 : i32
    %0 = arith.cmpi eq, %arg1, %c0_i32 : i32
    %1 = arith.extui %0 : i1 to i32
    %c0_i32_0 = arith.constant 0 : i32
    %2 = arith.cmpi ne, %1, %c0_i32_0 : i32
    scf.if %2 {
      %cst_35 = arith.constant 0.000000e+00 : f32
      %83 = vector.broadcast %cst_35 : f32 to vector<1x1xf32>
      %c0_36 = arith.constant 0 : index
      %c0_37 = arith.constant 0 : index
      %84 = vector.load %arg8[%c0_36, %c0_37] : memref<1x1xf32, #tpu.memory_space<vmem>>, vector<1x1xf32>
      tpu.vector_store %arg8[%c0_36, %c0_37], %83 {strides = array<i32>} : memref<1x1xf32, #tpu.memory_space<vmem>>, vector<1x1xf32>,
    } else {
    }
    %c2_i32 = arith.constant 2 : i32
    %3 = arith.muli %arg0, %c2_i32 : i32
    %4 = arith.addi %3, %arg1 : i32
    %c8_i32 = arith.constant 8 : i32
    %5 = arith.muli %4, %c8_i32 : i32
    %6 = tpu.assume_multiple %5, 8 : i32
    %7 = arith.index_cast %6 : i32 to index
    %c0 = arith.constant 0 : index
    %8 = vector.load %arg6[%7, %c0] : memref<32x1xf32, #tpu.memory_space<vmem>>, vector<8x1xf32>
    %9 = tpu.iota {dimensions = array<i32: 0>} : vector<8x1xi32>
    %10 = vector.broadcast %6 : i32 to vector<8x1xi32>
    %11 = arith.addi %10, %9 : vector<8x1xi32>
    %c20_i32 = arith.constant 20 : i32
    %12 = vector.broadcast %c20_i32 : i32 to vector<8x1xi32>
    %13 = arith.cmpi slt, %11, %12 : vector<8x1xi32>
    %c0_1 = arith.constant 0 : index
    %c0_2 = arith.constant 0 : index
    %14 = vector.load %arg8[%c0_1, %c0_2] : memref<1x1xf32, #tpu.memory_space<vmem>>, vector<1x1xf32>
    %c0_3 = arith.constant 0 : index
    %c0_4 = arith.constant 0 : index
    %15 = vector.load %arg2[%c0_3, %c0_4] : memref<8x32xf32, #tpu.memory_space<vmem>>, vector<8x32xf32>
    %c0_5 = arith.constant 0 : index
    %c0_6 = arith.constant 0 : index
    %16 = vector.load %arg3[%c0_5, %c0_6] : memref<8x32xf32, #tpu.memory_space<vmem>>, vector<8x32xf32>
    %17 = arith.mulf %15, %16 : vector<8x32xf32>
    %cst = arith.constant dense<0.000000e+00> : vector<8xf32>
    %18 = vector.multi_reduction <add>, %17, %cst [1] : vector<8x32xf32> to vector<8xf32>
    %19 = vector.shape_cast %18 : vector<8xf32> to vector<8x1xf32>
    %20 = arith.mulf %15, %15 : vector<8x32xf32>
    %cst_7 = arith.constant dense<0.000000e+00> : vector<8xf32>
    %21 = vector.multi_reduction <add>, %20, %cst_7 [1] : vector<8x32xf32> to vector<8xf32>
    %22 = vector.shape_cast %21 : vector<8xf32> to vector<8x1xf32>
    %23 = arith.mulf %16, %16 : vector<8x32xf32>
    %cst_8 = arith.constant dense<0.000000e+00> : vector<8xf32>
    %24 = vector.multi_reduction <add>, %23, %cst_8 [1] : vector<8x32xf32> to vector<8xf32>
    %25 = vector.shape_cast %24 : vector<8xf32> to vector<8x1xf32>
    %26 = arith.mulf %22, %25 : vector<8x1xf32>
    %cst_9 = arith.constant 1.000000e-16 : f32
    %27 = vector.broadcast %cst_9 : f32 to vector<8x1xf32>
    %28 = arith.maximumf %26, %27 : vector<8x1xf32>
    %29 = math.rsqrt %28 : vector<8x1xf32>
    %30 = arith.mulf %19, %29 : vector<8x1xf32>
    %cst_10 = arith.constant 0.000000e+00 : f32
    %31 = vector.broadcast %cst_10 : f32 to vector<8x1xf32>
    %32 = arith.cmpf ogt, %8, %31 : vector<8x1xf32>
    %cst_11 = arith.constant 1.000000e+00 : f32
    %33 = vector.broadcast %cst_11 : f32 to vector<8x1xf32>
    %34 = arith.subf %33, %30 : vector<8x1xf32>
    %cst_12 = arith.constant 2.000000e-01 : f32
    %35 = vector.broadcast %cst_12 : f32 to vector<8x1xf32>
    %36 = arith.subf %30, %35 : vector<8x1xf32>
    %cst_13 = arith.constant 0.000000e+00 : f32
    %37 = vector.broadcast %cst_13 : f32 to vector<8x1xf32>
    %38 = arith.maximumf %36, %37 : vector<8x1xf32>
    %39 = arith.select %32, %34, %38 : vector<8x1xi1>, vector<8x1xf32>
    %cst_14 = arith.constant 0.000000e+00 : f32
    %40 = vector.broadcast %cst_14 : f32 to vector<8x1xf32>
    %41 = arith.select %13, %39, %40 : vector<8x1xi1>, vector<8x1xf32>
    %cst_15 = arith.constant dense<0.000000e+00> : vector<1xf32>
    %42 = vector.multi_reduction <add>, %41, %cst_15 [0] : vector<8x1xf32> to vector<1xf32>
    %43 = vector.shape_cast %42 : vector<1xf32> to vector<1x1xf32>
    %cst_16 = arith.constant 3.500000e-02 : f32
    %44 = vector.broadcast %cst_16 : f32 to vector<1x1xf32>
    %45 = arith.mulf %44, %43 : vector<1x1xf32>
    %c0_17 = arith.constant 0 : index
    %c0_18 = arith.constant 0 : index
    %46 = vector.load %arg4[%c0_17, %c0_18] : memref<8x32xf32, #tpu.memory_space<vmem>>, vector<8x32xf32>
    %c0_19 = arith.constant 0 : index
    %c0_20 = arith.constant 0 : index
    %47 = vector.load %arg5[%c0_19, %c0_20] : memref<8x32xf32, #tpu.memory_space<vmem>>, vector<8x32xf32>
    %48 = arith.mulf %46, %47 : vector<8x32xf32>
    %cst_21 = arith.constant dense<0.000000e+00> : vector<8xf32>
    %49 = vector.multi_reduction <add>, %48, %cst_21 [1] : vector<8x32xf32> to vector<8xf32>
    %50 = vector.shape_cast %49 : vector<8xf32> to vector<8x1xf32>
    %51 = arith.mulf %46, %46 : vector<8x32xf32>
    %cst_22 = arith.constant dense<0.000000e+00> : vector<8xf32>
    %52 = vector.multi_reduction <add>, %51, %cst_22 [1] : vector<8x32xf32> to vector<8xf32>
    %53 = vector.shape_cast %52 : vector<8xf32> to vector<8x1xf32>
    %54 = arith.mulf %47, %47 : vector<8x32xf32>
    %cst_23 = arith.constant dense<0.000000e+00> : vector<8xf32>
    %55 = vector.multi_reduction <add>, %54, %cst_23 [1] : vector<8x32xf32> to vector<8xf32>
    %56 = vector.shape_cast %55 : vector<8xf32> to vector<8x1xf32>
    %57 = arith.mulf %53, %56 : vector<8x1xf32>
    %cst_24 = arith.constant 1.000000e-16 : f32
    %58 = vector.broadcast %cst_24 : f32 to vector<8x1xf32>
    %59 = arith.maximumf %57, %58 : vector<8x1xf32>
    %60 = math.rsqrt %59 : vector<8x1xf32>
    %61 = arith.mulf %50, %60 : vector<8x1xf32>
    %cst_25 = arith.constant 0.000000e+00 : f32
    %62 = vector.broadcast %cst_25 : f32 to vector<8x1xf32>
    %63 = arith.cmpf ogt, %8, %62 : vector<8x1xf32>
    %cst_26 = arith.constant 1.000000e+00 : f32
    %64 = vector.broadcast %cst_26 : f32 to vector<8x1xf32>
    %65 = arith.subf %64, %61 : vector<8x1xf32>
    %cst_27 = arith.constant 2.000000e-01 : f32
    %66 = vector.broadcast %cst_27 : f32 to vector<8x1xf32>
    %67 = arith.subf %61, %66 : vector<8x1xf32>
    %cst_28 = arith.constant 0.000000e+00 : f32
    %68 = vector.broadcast %cst_28 : f32 to vector<8x1xf32>
    %69 = arith.maximumf %67, %68 : vector<8x1xf32>
    %70 = arith.select %63, %65, %69 : vector<8x1xi1>, vector<8x1xf32>
    %cst_29 = arith.constant 0.000000e+00 : f32
    %71 = vector.broadcast %cst_29 : f32 to vector<8x1xf32>
    %72 = arith.select %13, %70, %71 : vector<8x1xi1>, vector<8x1xf32>
    %cst_30 = arith.constant dense<0.000000e+00> : vector<1xf32>
    %73 = vector.multi_reduction <add>, %72, %cst_30 [0] : vector<8x1xf32> to vector<1xf32>
    %74 = vector.shape_cast %73 : vector<1xf32> to vector<1x1xf32>
    %cst_31 = arith.constant 1.500000e-02 : f32
    %75 = vector.broadcast %cst_31 : f32 to vector<1x1xf32>
    %76 = arith.mulf %75, %74 : vector<1x1xf32>
    %77 = arith.addf %45, %76 : vector<1x1xf32>
    %78 = arith.addf %14, %77 : vector<1x1xf32>
    %c0_32 = arith.constant 0 : index
    %c0_33 = arith.constant 0 : index
    %79 = vector.load %arg8[%c0_32, %c0_33] : memref<1x1xf32, #tpu.memory_space<vmem>>, vector<1x1xf32>
    tpu.vector_store %arg8[%c0_32, %c0_33], %78 {strides = array<i32>} : memref<1x1xf32, #tpu.memory_space<vmem>>, vector<1x1xf32>,
    %c1_i32 = arith.constant 1 : i32
    %80 = arith.cmpi eq, %arg1, %c1_i32 : i32
    %81 = arith.extui %80 : i1 to i32
    %c0_i32_34 = arith.constant 0 : i32
    %82 = arith.cmpi ne, %81, %c0_i32_34 : i32
    scf.if %82 {
      %c0_35 = arith.constant 0 : index
      %c0_36 = arith.constant 0 : index
      %83 = vector.load %arg8[%c0_35, %c0_36] : memref<1x1xf32, #tpu.memory_space<vmem>>, vector<1x1xf32>
      %c0_37 = arith.constant 0 : index
      %c0_38 = arith.constant 0 : index
      %c0_39 = arith.constant 0 : index
      %84 = vector.load %arg7[%c0_37, %c0_38, %c0_39] : memref<1x1x1xf32, #tpu.memory_space<vmem>>, vector<1x1x1xf32>
      %85 = vector.shape_cast %84 : vector<1x1x1xf32> to vector<1x1xf32>
      %86 = vector.shape_cast %83 : vector<1x1xf32> to vector<1x1x1xf32>
      tpu.vector_store %arg7[%c0_37, %c0_38, %c0_39], %86 {strides = array<i32>} : memref<1x1x1xf32, #tpu.memory_space<vmem>>, vector<1x1x1xf32>,
    } else {
    }
    return
  }
  func.func @transform_0(%arg0: i32, %arg1: i32) -> (i32, i32) {
    %c2_i32 = arith.constant 2 : i32
    %0 = arith.muli %arg0, %c2_i32 : i32
    %1 = arith.addi %0, %arg1 : i32
    %c2_i32_0 = arith.constant 2 : i32
    %2 = arith.minsi %1, %c2_i32_0 : i32
    %c0_i32 = arith.constant 0 : i32
    %c0_i32_1 = arith.constant 0 : i32
    return %2, %c0_i32 : i32, i32
  }
  func.func @transform_1(%arg0: i32, %arg1: i32) -> (i32, i32) {
    %c2_i32 = arith.constant 2 : i32
    %0 = arith.muli %arg0, %c2_i32 : i32
    %1 = arith.addi %0, %arg1 : i32
    %c2_i32_0 = arith.constant 2 : i32
    %2 = arith.minsi %1, %c2_i32_0 : i32
    %c0_i32 = arith.constant 0 : i32
    %c0_i32_1 = arith.constant 0 : i32
    return %2, %c0_i32 : i32, i32
  }
  func.func @transform_2(%arg0: i32, %arg1: i32) -> (i32, i32) {
    %c2_i32 = arith.constant 2 : i32
    %0 = arith.muli %arg0, %c2_i32 : i32
    %1 = arith.addi %0, %arg1 : i32
    %c2_i32_0 = arith.constant 2 : i32
    %2 = arith.minsi %1, %c2_i32_0 : i32
    %c0_i32 = arith.constant 0 : i32
    %c0_i32_1 = arith.constant 0 : i32
    return %2, %c0_i32 : i32, i32
  }
  func.func @transform_3(%arg0: i32, %arg1: i32) -> (i32, i32) {
    %c2_i32 = arith.constant 2 : i32
    %0 = arith.muli %arg0, %c2_i32 : i32
    %1 = arith.addi %0, %arg1 : i32
    %c2_i32_0 = arith.constant 2 : i32
    %2 = arith.minsi %1, %c2_i32_0 : i32
    %c0_i32 = arith.constant 0 : i32
    %c0_i32_1 = arith.constant 0 : i32
    return %2, %c0_i32 : i32, i32
  }
  func.func @transform_4(%arg0: i32, %arg1: i32) -> (i32, i32) {
    %c0_i32 = arith.constant 0 : i32
    %c0_i32_0 = arith.constant 0 : i32
    %c0_i32_1 = arith.constant 0 : i32
    return %c0_i32, %c0_i32_0 : i32, i32
  }
  func.func @transform_5(%arg0: i32, %arg1: i32) -> (i32, i32, i32) {
    %c0_i32 = arith.constant 0 : i32
    %c0_i32_0 = arith.constant 0 : i32
    %c0_i32_1 = arith.constant 0 : i32
    return %arg0, %c0_i32, %c0_i32_0 : i32, i32, i32
  }
}

</mosaic_0001>

<llo_original>
// kernel: tpu_custom_call.1
$region0: #{tpu_custom_call.1}
  #allocation0 [shape = 'u32[]', space=smem, size = 0x4, offset = 0x4, fixed_abs, tag = 'smem constant byte address 0x4 - core index']
  #allocation1 [shape = 'u32[144,128]{1,0:T(1,128)}', space=vmem, size = 0x12000, scoped, tag = 'internal scratch']
  #allocation2 [shape = 'f32[1,1]{1,0:T(1,128)}', space=vmem, size = 0x200, scoped, tag = 'scratch operand']
  %s0 = inlined_call_operand.vmem [shape: f32[20,32], index: 0, kind: input, shape index: {}]
  %s1 = inlined_call_operand.hbm [shape: f32[20,32], index: 1, kind: input, shape index: {}]
  %s2 = inlined_call_operand.hbm [shape: f32[20,32], index: 2, kind: input, shape index: {}]
  %s3 = inlined_call_operand.hbm [shape: f32[20,32], index: 3, kind: input, shape index: {}]
  %s4 = inlined_call_operand.vmem [shape: f32[32,1], index: 4, kind: input, shape index: {}]
  %s5 = inlined_call_operand.vmem [shape: f32[2,1,1], index: 5, kind: output, shape index: {}]
  %s6 = sld [smem:[#allocation0]]
  $region73: #{tpu_custom_call.1} parent=0
    _
  %s8 = ssub.s32 1, %s6
  %s9 = scalar_select 0, %s8, %s6
  $region1: #{tpu_custom_call.1} parent=0
    #allocation3 [shape = 'u8[8192]{0}', space=vmem, size = 0x2000, scoped, tag = 'input window, operand 1']
    #allocation4 [shape = 's32[2]{0}', space=sflag, size = 0x8, scoped, tag = 'scoped memory for tpu_custom_call.1']
    #allocation5 [shape = 'u8[8192]{0}', space=vmem, size = 0x2000, scoped, tag = 'input window, operand 2']
    #allocation6 [shape = 's32[2]{0}', space=sflag, size = 0x8, scoped, tag = 'scoped memory for tpu_custom_call.1']
    #allocation7 [shape = 'u8[8192]{0}', space=vmem, size = 0x2000, scoped, tag = 'input window, operand 3']
    %10 = vsyncpa [#allocation4], 0
    %s11 = scalar_lea.sflag [#allocation4], 1
    %12 = vsyncpa %s11, 0
    %13 = vsyncpa [#allocation6], 0
    %s14 = scalar_lea.sflag [#allocation6], 1
    %15 = vsyncpa %s14, 0
    loop: start=0, step=1, limit=6
    $region2: #{tpu_custom_call.1} parent=1 // loop_pre_header
      _
    $region3: #{tpu_custom_call.1} parent=1 // loop_header
      %s17 = sphi 0, %s21
      %p18 = scmp.ge.s32.totalorder %s17, 6
      %s24 = sphi 0, %s36
      %s25 = sphi 0, %s32
      %s26 = sphi 0, %s24
      %s27 = sphi 0, %s25
      %s28 = sphi 0, %s26
      %s29 = sphi 0, %s27
      %s47 = sphi 0, %s49
      %s50 = sphi 0, %s47
      %s51 = sphi 0, %s50
      %s67 = sphi 0, %s51
      %s81 = sphi 0, %s83
      %s84 = sphi 0, %s81
      %s85 = sphi 0, %s84
      %s101 = sphi 0, %s85
      %s115 = sphi 0, %s117
      %s118 = sphi 0, %s115
      %s119 = sphi 0, %s118
      %s135 = sphi 0, %s119
      %s149 = sphi 0, %s151
      %s152 = sphi 0, %s149
      %s153 = sphi 0, %s152
      %s169 = sphi 0, %s153
      %s173 = sphi 0, %s173
      %s175 = sphi 0, %s173
      %s176 = sphi 0, %s175
      %s190 = sphi 0, %s176
      %s196 = sphi 0, %s198
      %s199 = sphi 0, %s196
      %s200 = sphi 0, %s199
      %s216 = sphi 0, %s200
    $region4: #{tpu_custom_call.1} parent=1 // loop_header_branch
      %20 = sbr.rel (%p18) target = $region8
    $region5: #{tpu_custom_call.1} parent=1 // loop_body
      %s22 = ssub.s32 %s17, 1
      %s23 = ssub.s32 %s17, 2
      %s30 = sadd.s32 1, %s25
      %p31 = scmp.ge.s32.totalorder %s30, 2
      %s32 = scalar_select %p31, 0, %s30
      %s33 = sadd.s32 1, %s24
      %s34 = scalar_select %p31, %s33, %s24
      %p35 = scmp.ge.s32.totalorder %s34, 2
      %s36 = scalar_select %p35, 0, %s34
      %s37 = smul.u32 %s24, 2
      %s38 = sadd.s32 %s37, %s25
      %p39 = scmp.lt.s32.totalorder %s38, 2
      %s40 = scalar_select %p39, %s38, 2
      %s41 = smul.u32 %s36, 2
      %s42 = sadd.s32 %s41, %s32
      %p43 = scmp.lt.s32.totalorder %s42, 2
      %s44 = scalar_select %p43, %s42, 2
      %s45 = ssub.s32 %s40, %s44
      %p46 = scmp.eq.s32.totalorder %s45, 0
      %s48 = sadd.s32 %s47, 1
      %s49 = scalar_select %p46, %s47, %s48
      %p52 = pneg %p46
      %p53 = scmp.eq.s32.totalorder %s17, 3
      %p54 = por %p52, %p53
      %p55 = scmp.ne.s32.totalorder %s47, %s50
      %p56 = scmp.eq.s32.totalorder %s17, 0
      %p57 = por %p55, %p56
      %p58 = scmp.ne.s32.totalorder %s47, %s50
      %p59 = scmp.eq.s32.totalorder %s22, 3
      %p60 = por %p58, %p59
      %p61 = scmp.ne.s32.totalorder %s50, %s51
      %p62 = scmp.eq.s32.totalorder %s22, 0
      %p63 = por %p61, %p62
      %p64 = scmp.ne.s32.totalorder %s50, %s51
      %p65 = scmp.eq.s32.totalorder %s23, 3
      %p66 = por %p64, %p65
      %p68 = scmp.ne.s32.totalorder %s51, %s67
      %p69 = scmp.eq.s32.totalorder %s23, 0
      %p70 = por %p68, %p69
      %s71 = smul.u32 %s24, 2
      %s72 = sadd.s32 %s71, %s25
      %p73 = scmp.lt.s32.totalorder %s72, 2
      %s74 = scalar_select %p73, %s72, 2
      %s75 = smul.u32 %s36, 2
      %s76 = sadd.s32 %s75, %s32
      %p77 = scmp.lt.s32.totalorder %s76, 2
      %s78 = scalar_select %p77, %s76, 2
      %s79 = ssub.s32 %s74, %s78
      %p80 = scmp.eq.s32.totalorder %s79, 0
      %s82 = sadd.s32 %s81, 1
      %s83 = scalar_select %p80, %s81, %s82
      %p86 = pneg %p80
      %p87 = scmp.eq.s32.totalorder %s17, 3
      %p88 = por %p86, %p87
      %p89 = scmp.ne.s32.totalorder %s81, %s84
      %p90 = scmp.eq.s32.totalorder %s17, 0
      %p91 = por %p89, %p90
      %p92 = scmp.ne.s32.totalorder %s81, %s84
      %p93 = scmp.eq.s32.totalorder %s22, 3
      %p94 = por %p92, %p93
      %p95 = scmp.ne.s32.totalorder %s84, %s85
      %p96 = scmp.eq.s32.totalorder %s22, 0
      %p97 = por %p95, %p96
      %p98 = scmp.ne.s32.totalorder %s84, %s85
      %p99 = scmp.eq.s32.totalorder %s23, 3
      %p100 = por %p98, %p99
      %p102 = scmp.ne.s32.totalorder %s85, %s101
      %p103 = scmp.eq.s32.totalorder %s23, 0
      %p104 = por %p102, %p103
      %s105 = smul.u32 %s24, 2
      %s106 = sadd.s32 %s105, %s25
      %p107 = scmp.lt.s32.totalorder %s106, 2
      %s108 = scalar_select %p107, %s106, 2
      %s109 = smul.u32 %s36, 2
      %s110 = sadd.s32 %s109, %s32
      %p111 = scmp.lt.s32.totalorder %s110, 2
      %s112 = scalar_select %p111, %s110, 2
      %s113 = ssub.s32 %s108, %s112
      %p114 = scmp.eq.s32.totalorder %s113, 0
      %s116 = sadd.s32 %s115, 1
      %s117 = scalar_select %p114, %s115, %s116
      %p120 = pneg %p114
      %p121 = scmp.eq.s32.totalorder %s17, 3
      %p122 = por %p120, %p121
      %p123 = scmp.ne.s32.totalorder %s115, %s118
      %p124 = scmp.eq.s32.totalorder %s17, 0
      %p125 = por %p123, %p124
      %p126 = scmp.ne.s32.totalorder %s115, %s118
      %p127 = scmp.eq.s32.totalorder %s22, 3
      %p128 = por %p126, %p127
      %p129 = scmp.ne.s32.totalorder %s118, %s119
      %p130 = scmp.eq.s32.totalorder %s22, 0
      %p131 = por %p129, %p130
      %p132 = scmp.ne.s32.totalorder %s118, %s119
      %p133 = scmp.eq.s32.totalorder %s23, 3
      %p134 = por %p132, %p133
      %p136 = scmp.ne.s32.totalorder %s119, %s135
      %p137 = scmp.eq.s32.totalorder %s23, 0
      %p138 = por %p136, %p137
      %s139 = smul.u32 %s24, 2
      %s140 = sadd.s32 %s139, %s25
      %p141 = scmp.lt.s32.totalorder %s140, 2
      %s142 = scalar_select %p141, %s140, 2
      %s143 = smul.u32 %s36, 2
      %s144 = sadd.s32 %s143, %s32
      %p145 = scmp.lt.s32.totalorder %s144, 2
      %s146 = scalar_select %p145, %s144, 2
      %s147 = ssub.s32 %s142, %s146
      %p148 = scmp.eq.s32.totalorder %s147, 0
      %s150 = sadd.s32 %s149, 1
      %s151 = scalar_select %p148, %s149, %s150
      %p154 = pneg %p148
      %p155 = scmp.eq.s32.totalorder %s17, 3
      %p156 = por %p154, %p155
      %p157 = scmp.ne.s32.totalorder %s149, %s152
      %p158 = scmp.eq.s32.totalorder %s17, 0
      %p159 = por %p157, %p158
      %p160 = scmp.ne.s32.totalorder %s149, %s152
      %p161 = scmp.eq.s32.totalorder %s22, 3
      %p162 = por %p160, %p161
      %p163 = scmp.ne.s32.totalorder %s152, %s153
      %p164 = scmp.eq.s32.totalorder %s22, 0
      %p165 = por %p163, %p164
      %p166 = scmp.ne.s32.totalorder %s152, %s153
      %p167 = scmp.eq.s32.totalorder %s23, 3
      %p168 = por %p166, %p167
      %p170 = scmp.ne.s32.totalorder %s153, %s169
      %p171 = scmp.eq.s32.totalorder %s23, 0
      %p172 = por %p170, %p171
      %s174 = sadd.s32 %s173, 1
      %p177 = scmp.eq.s32.totalorder %s17, 3
      %p178 = scmp.ne.s32.totalorder %s173, %s175
      %p179 = scmp.eq.s32.totalorder %s17, 0
      %p180 = por %p178, %p179
      %p181 = scmp.ne.s32.totalorder %s173, %s175
      %p182 = scmp.eq.s32.totalorder %s22, 3
      %p183 = por %p181, %p182
      %p184 = scmp.ne.s32.totalorder %s175, %s176
      %p185 = scmp.eq.s32.totalorder %s22, 0
      %p186 = por %p184, %p185
      %p187 = scmp.ne.s32.totalorder %s175, %s176
      %p188 = scmp.eq.s32.totalorder %s23, 3
      %p189 = por %p187, %p188
      %p191 = scmp.ne.s32.totalorder %s176, %s190
      %p192 = scmp.eq.s32.totalorder %s23, 0
      %p193 = por %p191, %p192
      %s194 = ssub.s32 %s24, %s36
      %p195 = scmp.eq.s32.totalorder %s194, 0
      %s197 = sadd.s32 %s196, 1
      %s198 = scalar_select %p195, %s196, %s197
      %p201 = pneg %p195
      %p202 = scmp.eq.s32.totalorder %s17, 3
      %p203 = por %p201, %p202
      %p204 = scmp.ne.s32.totalorder %s196, %s199
      %p205 = scmp.eq.s32.totalorder %s17, 0
      %p206 = por %p204, %p205
      %p207 = scmp.ne.s32.totalorder %s196, %s199
      %p208 = scmp.eq.s32.totalorder %s22, 3
      %p209 = por %p207, %p208
      %p210 = scmp.ne.s32.totalorder %s199, %s200
      %p211 = scmp.eq.s32.totalorder %s22, 0
      %p212 = por %p210, %p211
      %p213 = scmp.ne.s32.totalorder %s199, %s200
      %p214 = scmp.eq.s32.totalorder %s23, 3
      %p215 = por %p213, %p214
      %p217 = scmp.ne.s32.totalorder %s200, %s216
      %p218 = scmp.eq.s32.totalorder %s23, 0
      %p219 = por %p217, %p218
      %p220 = scmp.le.s32.totalorder 1, %s17
      %p221 = scmp.lt.s32.totalorder %s17, 5
      %p222 = pnand %p220, %p221
      %p223 = pneg %p222
      // Predicated region
      $region9: #{tpu_custom_call.1} parent=5 // pred_check
        _
      $region10: #{tpu_custom_call.1} parent=5 // pred_check_branch
        %225 = sbr.rel (%p222) target = $region12
      $region11: #{tpu_custom_call.1} parent=5 // pred_region
        %s226 = ssub.s32 %s17, 1
        // Predicated region
        $region13: #{tpu_custom_call.1} parent=11 // pred_check
          %p227 = pneg %p186
        $region14: #{tpu_custom_call.1} parent=11 // pred_check_branch
          %229 = sbr.rel (%p227) target = $region16
        $region15: #{tpu_custom_call.1} parent=11 // pred_region
          _
        $region16: #{tpu_custom_call.1} parent=11 // pred_fallthru
          _
      $region12: #{tpu_custom_call.1} parent=5 // pred_fallthru
        _
      %p230 = scmp.lt.s32.totalorder %s17, 4
      // Predicated region
      $region17: #{tpu_custom_call.1} parent=5 // pred_check
        %p231 = pneg %p230
      $region18: #{tpu_custom_call.1} parent=5 // pred_check_branch
        %233 = sbr.rel (%p231) target = $region20
      $region19: #{tpu_custom_call.1} parent=5 // pred_region
        // Predicated region
        $region21: #{tpu_custom_call.1} parent=19 // pred_check
          %p234 = pneg %p57
        $region22: #{tpu_custom_call.1} parent=19 // pred_check_branch
          %236 = sbr.rel (%p234) target = $region24
        $region23: #{tpu_custom_call.1} parent=19 // pred_region
          %s237 = smul.u32 %s24, 2
          %s238 = sadd.s32 %s237, %s25
          %p239 = scmp.lt.s32.totalorder %s238, 2
          %s240 = scalar_select %p239, %s238, 2
          %p241 = scmp.lt.s32.totalorder %s240, 2
          %s242 = scalar_select %p241, %s240, 2
          %s243 = smul.addr %s242, 8
          %s244 = scalar_lea.vmem %s0, %s243
          %s245 = smul.u32 %s24, 2
          %s246 = sadd.s32 %s245, %s25
          %p247 = scmp.lt.s32.totalorder %s246, 2
          %s248 = scalar_select %p247, %s246, 2
        $region24: #{tpu_custom_call.1} parent=19 // pred_fallthru
          _
        // Predicated region
        $region25: #{tpu_custom_call.1} parent=19 // pred_check
          %p249 = pneg %p91
        $region26: #{tpu_custom_call.1} parent=19 // pred_check_branch
          %251 = sbr.rel (%p249) target = $region28
        $region27: #{tpu_custom_call.1} parent=19 // pred_region
          %s252 = sand.u32 %s81, 1
          %s253 = scalar_lea.sflag [#allocation4], %s252
          %s254 = sand.u32 %s81, 1
          %s255 = smul.addr %s254, 8
          %s256 = scalar_lea.vmem [#allocation3], %s255
          %s257 = smul.u32 %s24, 2
          %s258 = sadd.s32 %s257, %s25
          %p259 = scmp.lt.s32.totalorder %s258, 2
          %s260 = scalar_select %p259, %s258, 2
          %s262 = ssub.s32 128, 128
          %263 = vsyncadd %s253, %s262
          %s264 = smul.addr %s260, 128
          %s265 = scalar_lea.hbm %s1, %s264
          %s267 = sshll.u32 %s256, 4
          %s268 = int_to_ptr.vmem [resolvable:$true] %s267
          %270 = dma.hbm_to_vmem [thread:$0]  %s265, 128, %s268, %s253
        $region28: #{tpu_custom_call.1} parent=19 // pred_fallthru
          _
        // Predicated region
        $region29: #{tpu_custom_call.1} parent=19 // pred_check
          %p271 = pneg %p125
        $region30: #{tpu_custom_call.1} parent=19 // pred_check_branch
          %273 = sbr.rel (%p271) target = $region32
        $region31: #{tpu_custom_call.1} parent=19 // pred_region
          %s274 = sand.u32 %s17, 1
          %s275 = scalar_lea.sflag [#allocation6], %s274
          %s276 = sand.u32 %s115, 1
          %s277 = smul.addr %s276, 8
          %s278 = scalar_lea.vmem [#allocation5], %s277
          %s279 = smul.u32 %s24, 2
          %s280 = sadd.s32 %s279, %s25
          %p281 = scmp.lt.s32.totalorder %s280, 2
          %s282 = scalar_select %p281, %s280, 2
          %s284 = ssub.s32 128, 128
          %285 = vsyncadd %s275, %s284
          %s286 = smul.addr %s282, 128
          %s287 = scalar_lea.hbm %s2, %s286
          %s289 = sshll.u32 %s278, 4
          %s290 = int_to_ptr.vmem [resolvable:$true] %s289
          %292 = dma.hbm_to_vmem [thread:$0]  %s287, 128, %s290, %s275
        $region32: #{tpu_custom_call.1} parent=19 // pred_fallthru
          _
        // Predicated region
        $region33: #{tpu_custom_call.1} parent=19 // pred_check
          %p293 = pneg %p159
        $region34: #{tpu_custom_call.1} parent=19 // pred_check_branch
          %295 = sbr.rel (%p293) target = $region36
        $region35: #{tpu_custom_call.1} parent=19 // pred_region
          %s296 = sand.u32 %s17, 1
          %s297 = scalar_lea.sflag [#allocation6], %s296
          %s298 = sand.u32 %s149, 1
          %s299 = smul.addr %s298, 8
          %s300 = scalar_lea.vmem [#allocation7], %s299
          %s301 = smul.u32 %s24, 2
          %s302 = sadd.s32 %s301, %s25
          %p303 = scmp.lt.s32.totalorder %s302, 2
          %s304 = scalar_select %p303, %s302, 2
          %s306 = ssub.s32 128, 128
          %307 = vsyncadd %s297, %s306
          %s308 = smul.addr %s304, 128
          %s309 = scalar_lea.hbm %s3, %s308
          %s311 = sshll.u32 %s300, 4
          %s312 = int_to_ptr.vmem [resolvable:$true] %s311
          %314 = dma.hbm_to_vmem [thread:$0]  %s309, 128, %s312, %s297
        $region36: #{tpu_custom_call.1} parent=19 // pred_fallthru
          _
      $region20: #{tpu_custom_call.1} parent=5 // pred_fallthru
        _
      %p315 = scmp.le.s32.totalorder 1, %s17
      %p316 = scmp.lt.s32.totalorder %s17, 5
      %p317 = pnand %p315, %p316
      %p318 = pneg %p317
      // Predicated region
      $region37: #{tpu_custom_call.1} parent=5 // pred_check
        _
      $region38: #{tpu_custom_call.1} parent=5 // pred_check_branch
        %320 = sbr.rel (%p317) target = $region40
      $region39: #{tpu_custom_call.1} parent=5 // pred_region
        %s321 = ssub.s32 %s17, 1
        %s322 = sand.u32 %s84, 1
        %s323 = scalar_lea.sflag [#allocation4], %s322
        %s324 = sand.u32 %s84, 1
        %s325 = smul.addr %s324, 8
        %s326 = scalar_lea.vmem [#allocation3], %s325
        // Predicated region
        $region41: #{tpu_custom_call.1} parent=39 // pred_check
          %p327 = pneg %p97
        $region42: #{tpu_custom_call.1} parent=39 // pred_check_branch
          %329 = sbr.rel (%p327) target = $region44
        $region43: #{tpu_custom_call.1} parent=39 // pred_region
          %330 = dma.done %s323, 128
        $region44: #{tpu_custom_call.1} parent=39 // pred_fallthru
          _
        %s331 = sand.u32 %s22, 1
        %s332 = scalar_lea.sflag [#allocation6], %s331
        %s333 = sand.u32 %s118, 1
        %s334 = smul.addr %s333, 8
        %s335 = scalar_lea.vmem [#allocation5], %s334
        // Predicated region
        $region45: #{tpu_custom_call.1} parent=39 // pred_check
          %p336 = pneg %p131
        $region46: #{tpu_custom_call.1} parent=39 // pred_check_branch
          %338 = sbr.rel (%p336) target = $region48
        $region47: #{tpu_custom_call.1} parent=39 // pred_region
          %339 = dma.done %s332, 128
        $region48: #{tpu_custom_call.1} parent=39 // pred_fallthru
          _
        %s340 = sand.u32 %s22, 1
        %s341 = scalar_lea.sflag [#allocation6], %s340
        %s342 = sand.u32 %s152, 1
        %s343 = smul.addr %s342, 8
        %s344 = scalar_lea.vmem [#allocation7], %s343
        // Predicated region
        $region49: #{tpu_custom_call.1} parent=39 // pred_check
          %p345 = pneg %p165
        $region50: #{tpu_custom_call.1} parent=39 // pred_check_branch
          %347 = sbr.rel (%p345) target = $region52
        $region51: #{tpu_custom_call.1} parent=39 // pred_region
          %348 = dma.done %s341, 128
        $region52: #{tpu_custom_call.1} parent=39 // pred_fallthru
          _
        %s349 = smul.u32 %s26, 2
        %s350 = sadd.s32 %s349, %s27
        %p351 = scmp.lt.s32.totalorder %s350, 2
        %s352 = scalar_select %p351, %s350, 2
        %p353 = scmp.lt.s32.totalorder %s352, 2
        %s354 = scalar_select %p353, %s352, 2
        %s355 = smul.addr %s354, 8
        %s356 = scalar_lea.vmem %s0, %s355
        %p357 = pneg %p63
        %p358 = pneg %p60
        %s359 = sand.u32 %s84, 1
        %s360 = scalar_lea.sflag [#allocation4], %s359
        %s361 = sand.u32 %s84, 1
        %s362 = smul.addr %s361, 8
        %s363 = scalar_lea.vmem [#allocation3], %s362
        %p364 = pneg %p97
        %p365 = pneg %p94
        %s366 = sand.u32 %s22, 1
        %s367 = scalar_lea.sflag [#allocation6], %s366
        %s368 = sand.u32 %s118, 1
        %s369 = smul.addr %s368, 8
        %s370 = scalar_lea.vmem [#allocation5], %s369
        %p371 = pneg %p131
        %p372 = pneg %p128
        %s373 = sand.u32 %s22, 1
        %s374 = scalar_lea.sflag [#allocation6], %s373
        %s375 = sand.u32 %s152, 1
        %s376 = smul.addr %s375, 8
        %s377 = scalar_lea.vmem [#allocation7], %s376
        %p378 = pneg %p165
        %p379 = pneg %p162
        %p380 = pneg %p186
        %p381 = pneg %p183
        %p382 = pneg %p212
        %p383 = pneg %p209
        %p384 = scmp.lt.s32.totalorder %s26, 1
        %s385 = scalar_select %p384, %s26, 1
        %s386 = scalar_lea.vmem %s5, %s385
        %s387 = smul.u32 %s26, 2
        %s388 = sadd.s32 %s387, %s27
        %p389 = scmp.lt.s32.totalorder %s388, 2
        %s390 = scalar_select %p389, %s388, 2
        %p391 = scmp.lt.s32.totalorder %s390, 2
        %s392 = scalar_select %p391, %s390, 2
        %s393 = smul.addr %s392, 8
        %s394 = scalar_lea.vmem %s0, %s393
        %s395 = smul.u32 %s26, 2
        %s396 = sadd.s32 %s395, %s27
        %p397 = scmp.lt.s32.totalorder %s396, 2
        %s398 = scalar_select %p397, %s396, 2
        %s399 = smul.u32 %s26, 2
        %s400 = sadd.s32 %s399, %s27
        %p401 = scmp.lt.s32.totalorder %s400, 2
        %s402 = scalar_select %p401, %s400, 2
        %s403 = smul.u32 %s26, 2
        %s404 = sadd.s32 %s403, %s27
        %p405 = scmp.lt.s32.totalorder %s404, 2
        %s406 = scalar_select %p405, %s404, 2
        %s407 = smul.u32 %s26, 2
        %s408 = sadd.s32 %s407, %s27
        %p409 = scmp.lt.s32.totalorder %s408, 2
        %s410 = scalar_select %p409, %s408, 2
        %p411 = scmp.lt.s32.totalorder %s26, 1
        %s412 = scalar_select %p411, %s26, 1
        %s413 = scalar_lea.vmem %s5, %s412
        %p414 = scmp.eq.s32.totalorder %s27, 0
        // Predicated region
        $region53: #{tpu_custom_call.1} parent=39 // pred_check
          %p415 = pneg %p414
        $region54: #{tpu_custom_call.1} parent=39 // pred_check_branch
          %417 = sbr.rel (%p415) target = $region56
        $region55: #{tpu_custom_call.1} parent=39 // pred_region
          %vm418 = vcmask 0
          %419 = vst.msk [vmem:[#allocation2] sm:$0x1] %vm418, 0.0
        $region56: #{tpu_custom_call.1} parent=39 // pred_fallthru
          _
        %s420 = smul.u32 %s26, 2
        %s421 = sadd.s32 %s420, %s27
        %s422 = smul.u32 %s421, 8
        %s423 = scalar_lea.vmem %s4, %s422
        %v424 = vld [vmem:[%s423] sm:$0xff]
        %v425 = vlaneseq
        %v426 = vshrl.u32 %v425, 7
        %v427 = vstv %s422
        %v428 = vadd.s32 %v427, %v426
        %vm429 = vcmp.lt.s32.totalorder %v428, 20
        %v430 = vld [vmem:[#allocation2] sm:$0x1]
        %v431 = vld [vmem:[%s394] sm:$0xff]
        %v432 = vld [vmem:[%s326] sm:$0xff]
        %v433 = vmul.f32 %v431, %v432
        %vm434 = vcmask 261120
        %v435 = vsel %vm434, %v433, 0.0
        %436 = vadd.xlane.f32.xlu0 %v435
        %v437 = vpop.xlane.xlu0 %436
        %v438 = vmul.f32 %v431, %v431
        %v439 = vsel %vm434, %v438, 0.0
        %440 = vadd.xlane.f32.xlu0 %v439
        %v441 = vpop.xlane.xlu0 %440
        %v442 = vmul.f32 %v432, %v432
        %v443 = vsel %vm434, %v442, 0.0
        %444 = vadd.xlane.f32.xlu0 %v443
        %v445 = vpop.xlane.xlu0 %444
        %v446 = vmul.f32 %v441, %v445
        %v447 = vmax.f32 %v446, 1e-16
        %v448 = vrsqrt.pop %v447
        %v449 = vmul.f32 %v437, %v448
        %vm450 = vcmp.gt.f32.partialorder %v424, 0.0
        %v451 = vsub.f32 1.0, %v449
        %v452 = vsub.f32 %v449, 0.2
        %v453 = vmax.f32 %v452, 0.0
        %v454 = vsel %vm450, %v451, %v453
        %v455 = vsel %vm429, %v454, 0.0
        %vm456 = vcmask 7168
        %v457 = vsel %vm456, %v455, 0.0
        %v458 = vrot.slane %v457, 4
        %v459 = vadd.f32 %v457, %v458
        %v460 = vrot.slane %v459, 2
        %v461 = vadd.f32 %v459, %v460
        %v462 = vrot.slane %v461, 1
        %v463 = vadd.f32 %v461, %v462
        %v464 = vmul.f32 %v463, 0.035
        %v465 = vld [vmem:[%s335] sm:$0xff]
        %v466 = vld [vmem:[%s344] sm:$0xff]
        %v467 = vmul.f32 %v465, %v466
        %v468 = vsel %vm434, %v467, 0.0
        %469 = vadd.xlane.f32.xlu0 %v468
        %v470 = vpop.xlane.xlu0 %469
        %v471 = vmul.f32 %v465, %v465
        %v472 = vsel %vm434, %v471, 0.0
        %473 = vadd.xlane.f32.xlu0 %v472
        %v474 = vpop.xlane.xlu0 %473
        %v475 = vmul.f32 %v466, %v466
        %v476 = vsel %vm434, %v475, 0.0
        %477 = vadd.xlane.f32.xlu0 %v476
        %v478 = vpop.xlane.xlu0 %477
        %v479 = vmul.f32 %v474, %v478
        %v480 = vmax.f32 %v479, 1e-16
        %v481 = vrsqrt.pop %v480
        %v482 = vmul.f32 %v470, %v481
        %v483 = vsub.f32 1.0, %v482
        %v484 = vsub.f32 %v482, 0.2
        %v485 = vmax.f32 %v484, 0.0
        %v486 = vsel %vm450, %v483, %v485
        %v487 = vsel %vm429, %v486, 0.0
        %v488 = vsel %vm456, %v487, 0.0
        %v489 = vrot.slane %v488, 4
        %v490 = vadd.f32 %v488, %v489
        %v491 = vrot.slane %v490, 2
        %v492 = vadd.f32 %v490, %v491
        %v493 = vrot.slane %v492, 1
        %v494 = vadd.f32 %v492, %v493
        %v495 = vmul.f32 %v494, 0.015
        %v496 = vadd.f32 %v464, %v495
        %v497 = vadd.f32 %v430, %v496
        %vm498 = vcmask 0
        %499 = vst.msk [vmem:[#allocation2] sm:$0x1] %vm498, %v497
        %p500 = scmp.eq.s32.totalorder %s27, 1
        // Predicated region
        $region57: #{tpu_custom_call.1} parent=39 // pred_check
          %p501 = pneg %p500
        $region58: #{tpu_custom_call.1} parent=39 // pred_check_branch
          %503 = sbr.rel (%p501) target = $region60
        $region59: #{tpu_custom_call.1} parent=39 // pred_region
          %v504 = vld [vmem:[#allocation2] sm:$0x1]
          %505 = vst.msk [vmem:[%s413] sm:$0x1] %vm498, %v504
        $region60: #{tpu_custom_call.1} parent=39 // pred_fallthru
          _
        %p506 = scmp.lt.s32.totalorder %s26, 1
        %s507 = scalar_select %p506, %s26, 1
        %s508 = scalar_lea.vmem %s5, %s507
        // Predicated region
        $region61: #{tpu_custom_call.1} parent=39 // pred_check
          %p509 = pneg %p209
        $region62: #{tpu_custom_call.1} parent=39 // pred_check_branch
          %511 = sbr.rel (%p509) target = $region64
        $region63: #{tpu_custom_call.1} parent=39 // pred_region
          _
        $region64: #{tpu_custom_call.1} parent=39 // pred_fallthru
          _
      $region40: #{tpu_custom_call.1} parent=5 // pred_fallthru
        _
      %p512 = scmp.le.s32.totalorder 2, %s17
      // Predicated region
      $region65: #{tpu_custom_call.1} parent=5 // pred_check
        %p513 = pneg %p512
      $region66: #{tpu_custom_call.1} parent=5 // pred_check_branch
        %515 = sbr.rel (%p513) target = $region68
      $region67: #{tpu_custom_call.1} parent=5 // pred_region
        %s516 = ssub.s32 %s17, 2
        // Predicated region
        $region69: #{tpu_custom_call.1} parent=67 // pred_check
          %p517 = pneg %p215
        $region70: #{tpu_custom_call.1} parent=67 // pred_check_branch
          %519 = sbr.rel (%p517) target = $region72
        $region71: #{tpu_custom_call.1} parent=67 // pred_region
          %p520 = scmp.lt.s32.totalorder %s28, 1
          %s521 = scalar_select %p520, %s28, 1
          %s522 = scalar_lea.vmem %s5, %s521
        $region72: #{tpu_custom_call.1} parent=67 // pred_fallthru
          _
      $region68: #{tpu_custom_call.1} parent=5 // pred_fallthru
        _
    $region6: #{tpu_custom_call.1} parent=1 // loop_footer
      %s21 = sadd.s32 1, %s17
    $region7: #{tpu_custom_call.1} parent=1 // loop_footer_branch
      %16 = sbr.rel target = $region3
    $region8: #{tpu_custom_call.1} parent=1 // loop_exit
      _
    %523 = vsyncpa [#allocation4], 1
    %s524 = scalar_lea.sflag [#allocation4], 1
    %525 = vsyncpa %s524, 1
    %526 = vsyncpa [#allocation6], 1
    %s527 = scalar_lea.sflag [#allocation6], 1
    %528 = vsyncpa %s527, 1

</llo_original>
